<compile_context>
chip_gen: v7x
topology: tpu7x:2x2x1
jax: 0.10.0
libtpu: 0.0.40
codegen_flags: <defaults>
</compile_context>

<pallas_src>
import functools
import math

import jax
import jax.numpy as jnp
from jax import lax
from jax.experimental import pallas as pl
from jax.experimental.pallas import tpu as pltpu


_BIG = 1.0e18                           # squared-domain sentinel: sqrt(1e18) == 1e9 (matches torch code)
_PAD_SQ = 1.0e18                        # squared-column-norm sentinel marking padded columns
_PAD_LABEL = jnp.iinfo(jnp.int32).min   # label sentinel for padded rows/columns


def _round_up(v, m):
    return ((v + m - 1) // m) * m


def _lcm(a, b):
    return a * b // math.gcd(a, b)


def _vmem_limit(nbytes):
    # Explicit scoped-VMEM request: 2x headroom, floored at 32 MiB (above v5e's
    # 16 MiB default, below every chip's physical), capped at 64 MiB (v7x/TC).
    return int(min(max(2 * nbytes + (8 << 20), 32 << 20), 64 << 20))


# --------------------------------------------------------------------------
# Stage 1 (fused prologue): L2-normalize rows, emit the pre-transposed RHS
# already scaled by -2, and the per-row squared norms.
# --------------------------------------------------------------------------
def _prep_kernel(x_ref, xn_ref, xtn_ref, sqr_ref):
    # F.normalize(x, p=2, dim=1): x * rsqrt(max(||x||^2, 1e-24))  (rsqrt on EUP)
    x = x_ref[...]                                        # (tm, dpad)
    sumsq = jnp.sum(x * x, axis=1, keepdims=True)         # (tm, 1)
    xn = x * lax.rsqrt(jnp.maximum(sumsq, 1e-24))
    xn_ref[...] = xn.astype(xn_ref.dtype)
    # Pre-transposed MXU RHS with the -2 of the expanded squared distance
    # folded in: stage 2 computes d2 = sq_r + sq_c + (xr @ xtn), no extra mul.
    xtn_ref[...] = (xn * (-2.0)).T.astype(xtn_ref.dtype)  # (dpad, tm)
    # Exact per-row squared norms of the normalized rows (also reused by the
    # wrapper as the column term, plus the padded-column sentinel).
    sqr_ref[...] = jnp.sum(xn * xn, axis=1, keepdims=True)


# --------------------------------------------------------------------------
# Stage 2: column-tiled hardest-positive / hardest-negative accumulation.
# Grid = (row blocks [parallel], column blocks [arbitrary, last]).
# --------------------------------------------------------------------------
def _triplet_kernel(xr_ref, sqr_ref, lrow_ref, rid_ref,
                    xtn_ref, sqc_ref, lcol_ref, cid_ref,
                    out_ref, ap2_ref, an2_ref, *, margin):
    k = pl.program_id(1)

    @pl.when(k == 0)
    def _init():
        ap2_ref[...] = jnp.zeros_like(ap2_ref)            # matches diag's exact-0 positive
        an2_ref[...] = jnp.full_like(an2_ref, _BIG)        # matches the +1e9 positive mask

    # Gram block on the MXU; RHS arrives pre-transposed and pre-scaled by -2.
    g = jnp.dot(xr_ref[...], xtn_ref[...],
                preferred_element_type=jnp.float32)        # (tm, tn)
    # Squared pairwise distances (sqrt deferred past the reductions).
    d2 = jnp.maximum(sqr_ref[...] + sqc_ref[...] + g, 0.0)  # (tm, tn)

    # Padded columns carry the _PAD_LABEL sentinel so they can never be
    # positives; the _PAD_SQ column-norm sentinel keeps them out of the min.
    mask_pos = lcol_ref[...] == lrow_ref[...]               # (tm, tn)
    off_diag = rid_ref[...] != cid_ref[...]                  # exact-zero self distance

    ap2_ref[...] = jnp.maximum(
        ap2_ref[...],
        jnp.max(jnp.where(mask_pos & off_diag, d2, 0.0), axis=1, keepdims=True))
    an2_ref[...] = jnp.minimum(
        an2_ref[...],
        jnp.min(jnp.where(mask_pos, _BIG, d2), axis=1, keepdims=True))

    @pl.when(k == pl.num_programs(1) - 1)
    def _finalize():
        out_ref[...] = jnp.maximum(
            jnp.sqrt(ap2_ref[...]) - jnp.sqrt(an2_ref[...]) + margin, 0.0)


def triplet_loss_cls(features, labels, margin=0.3, block_rows=128,
                     block_cols=512, use_bf16=False):
    """Pallas implementation of TripletLoss_cls.forward. Returns a scalar loss."""
    features = jnp.asarray(features, jnp.float32)
    labels = jnp.asarray(labels, jnp.int32).reshape(-1)
    n, d = features.shape

    # Tile sizes are forced to multiples of 128 so the stage-1 transposed
    # output block (dpad, tm) and every stage-2 column block are lane-aligned.
    tm = _round_up(min(block_rows, max(n, 1)), 128)
    tn = _round_up(min(block_cols, max(n, 1)), 128)
    npad = _round_up(n, _lcm(tm, tn))
    dpad = _round_up(d, 128)
    grid_m = npad // tm
    grid_k = npad // tn

    mm_dtype = jnp.bfloat16 if use_bf16 else jnp.float32
    mm_bytes = 2 if use_bf16 else 4

    x = jnp.pad(features, ((0, npad - n), (0, dpad - d)))

    # ---- Stage 1: fused normalize + (-2 * x_n)^T + row squared norms -------
    s1_need = (2 * tm * dpad * 4                  # input block, double-buffered
               + 2 * tm * dpad * mm_bytes         # xn output
               + 2 * dpad * tm * mm_bytes         # transposed output
               + 2 * tm * 128 * 4)                # sq_row output (lane-padded)
    xn, xtn, sq_row = pl.pallas_call(
        _prep_kernel,
        out_shape=(jax.ShapeDtypeStruct((npad, dpad), mm_dtype),
                   jax.ShapeDtypeStruct((dpad, npad), mm_dtype),
                   jax.ShapeDtypeStruct((npad, 1), jnp.float32)),
        grid=(grid_m,),
        in_specs=[pl.BlockSpec((tm, dpad), lambda i: (i, 0))],
        out_specs=(pl.BlockSpec((tm, dpad), lambda i: (i, 0)),
                   pl.BlockSpec((dpad, tm), lambda i: (0, i)),
                   pl.BlockSpec((tm, 1), lambda i: (i, 0))),
        compiler_params=pltpu.CompilerParams(
            dimension_semantics=("parallel",),
            vmem_limit_bytes=_vmem_limit(s1_need)),
    )(x)

    # Tiny O(N) prep (no full HBM passes over N x D): column squared norms with
    # the pad sentinel, sentinel-padded labels, and row/column index vectors.
    col_idx = jnp.arange(npad, dtype=jnp.int32)
    sq_col = jnp.where(col_idx < n, sq_row[:, 0], _PAD_SQ).reshape(1, npad)
    sq_col = sq_col.astype(jnp.float32)

    lab = jnp.pad(labels, (0, npad - n), constant_values=_PAD_LABEL)
    lab_row = lab.reshape(npad, 1)
    lab_col = lab.reshape(1, npad)
    rid = col_idx.reshape(npad, 1)
    cid = col_idx.reshape(1, npad)

    # ---- Stage 2: row x column tiled hardest-positive / hardest-negative ----
    s2_need = (2 * tm * dpad * mm_bytes           # LHS row block
               + 2 * dpad * tn * mm_bytes         # RHS column block
               + 2 * 3 * tm * 128 * 4             # sq_row / lab_row / rid blocks
               + 2 * 3 * 8 * tn * 4               # sq_col / lab_col / cid blocks
               + 2 * tm * 128 * 4                 # output block
               + 2 * tm * 128 * 4                 # ap2 / an2 scratch
               + 4 * tm * tn * 4)                 # (tm,tn) elementwise temporaries
    cost = pl.CostEstimate(
        flops=int(2 * grid_m * tm * npad * dpad + 12 * npad * npad),
        transcendentals=int(2 * npad),
        bytes_accessed=int(grid_m * npad * dpad * mm_bytes
                           + npad * dpad * mm_bytes + 8 * npad * 4),
    )

    kernel = functools.partial(_triplet_kernel, margin=float(margin))
    loss_rows = pl.pallas_call(
        kernel,
        out_shape=jax.ShapeDtypeStruct((npad, 1), jnp.float32),
        grid=(grid_m, grid_k),
        in_specs=[
            pl.BlockSpec((tm, dpad), lambda i, k: (i, 0)),   # normalized query rows (LHS)
            pl.BlockSpec((tm, 1), lambda i, k: (i, 0)),      # row squared norms
            pl.BlockSpec((tm, 1), lambda i, k: (i, 0)),      # row labels
            pl.BlockSpec((tm, 1), lambda i, k: (i, 0)),      # global row indices
            pl.BlockSpec((dpad, tn), lambda i, k: (0, k)),   # -2 * xn^T column block (RHS)
            pl.BlockSpec((1, tn), lambda i, k: (0, k)),      # column sq norms (+pad sentinel)
            pl.BlockSpec((1, tn), lambda i, k: (0, k)),      # column labels (pad = sentinel)
            pl.BlockSpec((1, tn), lambda i, k: (0, k)),      # global column indices
        ],
        out_specs=pl.BlockSpec((tm, 1), lambda i, k: (i, 0)),
        scratch_shapes=[pltpu.VMEM((tm, 1), jnp.float32),    # running ap2 (max)
                        pltpu.VMEM((tm, 1), jnp.float32)],   # running an2 (min)
        compiler_params=pltpu.CompilerParams(
            dimension_semantics=("parallel", "arbitrary"),
            vmem_limit_bytes=_vmem_limit(s2_need)),
        cost_estimate=cost,
    )(xn, sq_row, lab_row, rid, xtn, sq_col, lab_col, cid)

    # Tiny O(N) finalization in JAX: mean over strictly-positive hinge losses
    # (the reference's data-dependent branch becomes a jnp.where).
    loss_vec = loss_rows[:n, 0]
    cnt = jnp.sum((loss_vec > 0.0).astype(jnp.float32))
    total = jnp.sum(loss_vec)
    return jnp.where(cnt > 0.0, total / jnp.maximum(cnt, 1.0), 0.0)


def _reference_loss(features, labels, margin=0.3):
    """Pure-JAX reference mirroring the PyTorch module."""
    x = features.astype(jnp.float32)
    x = x / jnp.maximum(jnp.linalg.norm(x, axis=1, keepdims=True), 1e-12)
    d2 = jnp.sum((x[:, None, :] - x[None, :, :]) ** 2, axis=-1)
    dist = jnp.sqrt(jnp.maximum(d2, 0.0))
    mp = (labels[:, None] == labels[None, :]).astype(jnp.float32)
    mn = 1.0 - mp
    dist_ap = jnp.max(dist * mp, axis=1)
    dist_an = jnp.min(dist * mn + mp * 1.0e9, axis=1)
    loss = jnp.maximum(dist_ap - dist_an + margin, 0.0)
    cnt = jnp.sum(loss > 0)
    return jnp.where(cnt > 0, jnp.sum(loss) / jnp.maximum(cnt, 1), 0.0)


if __name__ == "__main__":
    key = jax.random.PRNGKey(0)
    k1, k2, k3, k4, k5, k6 = jax.random.split(key, 6)

    # Case 1: tiny batch, single tile.
    f1 = jax.random.normal(k1, (8, 32), dtype=jnp.float32)
    l1 = jax.random.randint(k2, (8,), 0, 3, dtype=jnp.int32)
    out1 = jax.block_until_ready(triplet_loss_cls(f1, l1, margin=0.3))
    ref1 = jax.block_until_ready(_reference_loss(f1, l1, margin=0.3))
    assert jnp.allclose(out1, ref1, atol=1e-4, rtol=1e-4), (out1, ref1)

    # Case 2: row/feature padding (non-multiples of 8 / 128).
    f2 = jax.random.normal(k3, (20, 48), dtype=jnp.float32)
    l2 = jax.random.randint(k4, (20,), 0, 4, dtype=jnp.int32)
    out2 = jax.block_until_ready(triplet_loss_cls(f2, l2, margin=0.3))
    ref2 = jax.block_until_ready(_reference_loss(f2, l2, margin=0.3))
    assert jnp.allclose(out2, ref2, atol=1e-4, rtol=1e-4), (out2, ref2)

    # Case 3: multiple row blocks ("parallel" axis) AND multiple column blocks
    # (scratch accumulator init/finalize over the trailing "arbitrary" axis).
    f3 = jax.random.normal(k5, (200, 64), dtype=jnp.float32)
    l3 = jax.random.randint(k6, (200,), 0, 5, dtype=jnp.int32)
    out3 = jax.block_until_ready(
        triplet_loss_cls(f3, l3, margin=0.3, block_rows=128, block_cols=128))
    ref3 = jax.block_until_ready(_reference_loss(f3, l3, margin=0.3))
    assert jnp.allclose(out3, ref3, atol=1e-4, rtol=1e-4), (out3, ref3)

    # Case 4: all labels equal -> no negatives -> loss must be 0 (like torch).
    l4 = jnp.zeros((8,), jnp.int32)
    out4 = jax.block_until_ready(triplet_loss_cls(f1, l4, margin=0.3))
    ref4 = jax.block_until_ready(_reference_loss(f1, l4, margin=0.3))
    assert jnp.allclose(out4, ref4, atol=1e-4, rtol=1e-4), (out4, ref4)

    print("KERNEL_OK")
</pallas_src>

<mosaic_0001>
module attributes {stable_mosaic.version = 11 : i64} {
  func.func @_prep_kernel(%arg0: i32, %arg1: memref<128x128xf32, #tpu.memory_space<vmem>>, %arg2: memref<128x128xf32, #tpu.memory_space<vmem>>, %arg3: memref<128x128xf32, #tpu.memory_space<vmem>>, %arg4: memref<128x1xf32, #tpu.memory_space<vmem>>) attributes {dimension_semantics = [#tpu.dimension_semantics<parallel>], iteration_bounds = array<i64: 1>, scalar_prefetch = 0 : i64, scratch_operands = 0 : i64, tpu.core_type = #tpu.core_type<tc>, window_params = [{transform_indices = @transform_0, window_bounds = array<i64: 128, 128>}, {transform_indices = @transform_1, window_bounds = array<i64: 128, 128>}, {transform_indices = @transform_2, window_bounds = array<i64: 128, 128>}, {transform_indices = @transform_3, window_bounds = array<i64: 128, 1>}]} {
    %c0 = arith.constant 0 : index
    %c0_0 = arith.constant 0 : index
    %0 = vector.load %arg1[%c0, %c0_0] : memref<128x128xf32, #tpu.memory_space<vmem>>, vector<128x128xf32>
    %1 = arith.mulf %0, %0 : vector<128x128xf32>
    %cst = arith.constant dense<0.000000e+00> : vector<128xf32>
    %2 = vector.multi_reduction <add>, %1, %cst [1] : vector<128x128xf32> to vector<128xf32>
    %3 = vector.shape_cast %2 : vector<128xf32> to vector<128x1xf32>
    %cst_1 = arith.constant 1.000000e-24 : f32
    %4 = vector.broadcast %cst_1 : f32 to vector<128x1xf32>
    %5 = arith.maximumf %3, %4 : vector<128x1xf32>
    %6 = math.rsqrt %5 : vector<128x1xf32>
    %7 = vector.broadcast %6 : vector<128x1xf32> to vector<128x128xf32>
    %8 = arith.mulf %0, %7 : vector<128x128xf32>
    %c0_2 = arith.constant 0 : index
    %c0_3 = arith.constant 0 : index
    %9 = vector.load %arg2[%c0_2, %c0_3] : memref<128x128xf32, #tpu.memory_space<vmem>>, vector<128x128xf32>
    tpu.vector_store %arg2[%c0_2, %c0_3], %8 {strides = array<i32>} : memref<128x128xf32, #tpu.memory_space<vmem>>, vector<128x128xf32>,
    %cst_4 = arith.constant -2.000000e+00 : f32
    %10 = vector.broadcast %cst_4 : f32 to vector<128x128xf32>
    %11 = arith.mulf %8, %10 : vector<128x128xf32>
    %12 = tpu.transpose %11, [1, 0] : vector<128x128xf32> -> vector<128x128xf32>
    %c0_5 = arith.constant 0 : index
    %c0_6 = arith.constant 0 : index
    %13 = vector.load %arg3[%c0_5, %c0_6] : memref<128x128xf32, #tpu.memory_space<vmem>>, vector<128x128xf32>
    tpu.vector_store %arg3[%c0_5, %c0_6], %12 {strides = array<i32>} : memref<128x128xf32, #tpu.memory_space<vmem>>, vector<128x128xf32>,
    %14 = arith.mulf %8, %8 : vector<128x128xf32>
    %cst_7 = arith.constant dense<0.000000e+00> : vector<128xf32>
    %15 = vector.multi_reduction <add>, %14, %cst_7 [1] : vector<128x128xf32> to vector<128xf32>
    %16 = vector.shape_cast %15 : vector<128xf32> to vector<128x1xf32>
    %c0_8 = arith.constant 0 : index
    %c0_9 = arith.constant 0 : index
    %17 = vector.load %arg4[%c0_8, %c0_9] : memref<128x1xf32, #tpu.memory_space<vmem>>, vector<128x1xf32>
    tpu.vector_store %arg4[%c0_8, %c0_9], %16 {strides = array<i32>} : memref<128x1xf32, #tpu.memory_space<vmem>>, vector<128x1xf32>,
    return
  }
  func.func @transform_0(%arg0: i32) -> (i32, i32) {
    %c0_i32 = arith.constant 0 : i32
    %c0_i32_0 = arith.constant 0 : i32
    return %arg0, %c0_i32 : i32, i32
  }
  func.func @transform_1(%arg0: i32) -> (i32, i32) {
    %c0_i32 = arith.constant 0 : i32
    %c0_i32_0 = arith.constant 0 : i32
    return %arg0, %c0_i32 : i32, i32
  }
  func.func @transform_2(%arg0: i32) -> (i32, i32) {
    %c0_i32 = arith.constant 0 : i32
    %c0_i32_0 = arith.constant 0 : i32
    return %c0_i32, %arg0 : i32, i32
  }
  func.func @transform_3(%arg0: i32) -> (i32, i32) {
    %c0_i32 = arith.constant 0 : i32
    %c0_i32_0 = arith.constant 0 : i32
    return %arg0, %c0_i32 : i32, i32
  }
}

</mosaic_0001>

<llo_original>
// kernel: tpu_custom_call.1
$region0: #{tpu_custom_call.1}
  #allocation0 [shape = 'u32[]', space=smem, size = 0x4, offset = 0x4, fixed_abs, tag = 'smem constant byte address 0x4 - core index']
  #allocation1 [shape = 'u32[144,128]{1,0:T(1,128)}', space=vmem, size = 0x12000, scoped, tag = 'internal scratch']
  %s0 = inlined_call_operand.hbm [shape: f32[128,128], index: 0, kind: input, shape index: {}]
  %s1 = inlined_call_operand.hbm [shape: f32[128,128], index: 1, kind: output, shape index: {0}]
  %s2 = inlined_call_operand.hbm [shape: f32[128,128], index: 2, kind: output, shape index: {1}]
  %s3 = inlined_call_operand.vmem [shape: f32[128,1], index: 3, kind: output, shape index: {2}]
  %4 = xla_tuple %s1, %s2, %s3
  %s5 = sld [smem:[#allocation0]]
  $region34: #{tpu_custom_call.1} parent=0
    _
  %s7 = ssub.s32 1, %s5
  %s8 = scalar_select 0, %s7, %s5
  $region1: #{tpu_custom_call.1} parent=0
    #allocation2 [shape = 'u8[65536]{0}', space=vmem, size = 0x10000, scoped, tag = 'input window, operand 0, single buffered']
    #allocation3 [shape = 's32[1]{0}', space=sflag, size = 0x4, scoped, tag = 'scoped memory for tpu_custom_call.1']
    #allocation4 [shape = 's32[1]{0}', space=sflag, size = 0x4, scoped, tag = 'scoped memory for tpu_custom_call.1']
    #allocation5 [shape = 'u8[65536]{0}', space=vmem, size = 0x10000, scoped, tag = 'output window, operand 0, single buffered']
    #allocation6 [shape = 'u8[65536]{0}', space=vmem, size = 0x10000, scoped, tag = 'output window, operand 1, single buffered']
    #allocation7 [shape = 's32[1]{0}', space=sflag, size = 0x4, scoped, tag = 'scoped memory for tpu_custom_call.1']
    %9 = vsyncpa [#allocation3], 0
    %10 = vsyncpa [#allocation4], 0
    %11 = vsyncpa [#allocation7], 0
    // Predicated region
    $region2: #{tpu_custom_call.1} parent=1 // pred_check
      _
    $region3: #{tpu_custom_call.1} parent=1 // pred_check_branch
      %13 = sbr.rel (0) target = $region5
    $region4: #{tpu_custom_call.1} parent=1 // pred_region
      %s15 = ssub.s32 2048, 2048
      %16 = vsyncadd [#allocation3], %s15
      %s17 = sshll.u32 [#allocation2], 4
      %s18 = int_to_ptr.vmem [resolvable:$true] %s17
      %23 = dma.hbm_to_vmem [thread:$0]  %s0, 2048, %s18, [#allocation3], 128, 128, 8
    $region5: #{tpu_custom_call.1} parent=1 // pred_fallthru
      _
    // Predicated region
    $region6: #{tpu_custom_call.1} parent=1 // pred_check
      _
    $region7: #{tpu_custom_call.1} parent=1 // pred_check_branch
      %25 = sbr.rel (0) target = $region9
    $region8: #{tpu_custom_call.1} parent=1 // pred_region
      %26 = dma.done [#allocation3], 2048
    $region9: #{tpu_custom_call.1} parent=1 // pred_fallthru
      _
    %v27 = vld [vmem:[#allocation2] sm:$0xff]
    %v28 = vld [vmem:[#allocation2 + $0x8] sm:$0xff]
    %v29 = vld [vmem:[#allocation2 + $0x10] sm:$0xff]
    %v30 = vld [vmem:[#allocation2 + $0x18] sm:$0xff]
    %v31 = vld [vmem:[#allocation2 + $0x20] sm:$0xff]
    %v32 = vld [vmem:[#allocation2 + $0x28] sm:$0xff]
    %v33 = vld [vmem:[#allocation2 + $0x30] sm:$0xff]
    %v34 = vld [vmem:[#allocation2 + $0x38] sm:$0xff]
    %v35 = vld [vmem:[#allocation2 + $0x40] sm:$0xff]
    %v36 = vld [vmem:[#allocation2 + $0x48] sm:$0xff]
    %v37 = vld [vmem:[#allocation2 + $0x50] sm:$0xff]
    %v38 = vld [vmem:[#allocation2 + $0x58] sm:$0xff]
    %v39 = vld [vmem:[#allocation2 + $0x60] sm:$0xff]
    %v40 = vld [vmem:[#allocation2 + $0x68] sm:$0xff]
    %v41 = vld [vmem:[#allocation2 + $0x70] sm:$0xff]
    %v42 = vld [vmem:[#allocation2 + $0x78] sm:$0xff]
    %v43 = vmul.f32 %v27, %v27
    %v44 = vmul.f32 %v28, %v28
    %v45 = vmul.f32 %v29, %v29
    %v46 = vmul.f32 %v30, %v30
    %v47 = vmul.f32 %v31, %v31
    %v48 = vmul.f32 %v32, %v32
    %v49 = vmul.f32 %v33, %v33
    %v50 = vmul.f32 %v34, %v34
    %v51 = vmul.f32 %v35, %v35
    %v52 = vmul.f32 %v36, %v36
    %v53 = vmul.f32 %v37, %v37
    %v54 = vmul.f32 %v38, %v38
    %v55 = vmul.f32 %v39, %v39
    %v56 = vmul.f32 %v40, %v40
    %v57 = vmul.f32 %v41, %v41
    %v58 = vmul.f32 %v42, %v42
    %59 = vadd.xlane.f32.xlu0 %v43
    %v60 = vpop.xlane.xlu0 %59
    %61 = vadd.xlane.f32.xlu0 %v44
    %v62 = vpop.xlane.xlu0 %61
    %63 = vadd.xlane.f32.xlu0 %v45
    %v64 = vpop.xlane.xlu0 %63
    %65 = vadd.xlane.f32.xlu0 %v46
    %v66 = vpop.xlane.xlu0 %65
    %67 = vadd.xlane.f32.xlu0 %v47
    %v68 = vpop.xlane.xlu0 %67
    %69 = vadd.xlane.f32.xlu0 %v48
    %v70 = vpop.xlane.xlu0 %69
    %71 = vadd.xlane.f32.xlu0 %v49
    %v72 = vpop.xlane.xlu0 %71
    %73 = vadd.xlane.f32.xlu0 %v50
    %v74 = vpop.xlane.xlu0 %73
    %75 = vadd.xlane.f32.xlu0 %v51
    %v76 = vpop.xlane.xlu0 %75
    %77 = vadd.xlane.f32.xlu0 %v52
    %v78 = vpop.xlane.xlu0 %77
    %79 = vadd.xlane.f32.xlu0 %v53
    %v80 = vpop.xlane.xlu0 %79
    %81 = vadd.xlane.f32.xlu0 %v54
    %v82 = vpop.xlane.xlu0 %81
    %83 = vadd.xlane.f32.xlu0 %v55
    %v84 = vpop.xlane.xlu0 %83
    %85 = vadd.xlane.f32.xlu0 %v56
    %v86 = vpop.xlane.xlu0 %85
    %87 = vadd.xlane.f32.xlu0 %v57
    %v88 = vpop.xlane.xlu0 %87
    %89 = vadd.xlane.f32.xlu0 %v58
    %v90 = vpop.xlane.xlu0 %89
    %v91 = vmax.f32 %v60, 1e-24
    %v92 = vmax.f32 %v62, 1e-24
    %v93 = vmax.f32 %v64, 1e-24
    %v94 = vmax.f32 %v66, 1e-24
    %v95 = vmax.f32 %v68, 1e-24
    %v96 = vmax.f32 %v70, 1e-24
    %v97 = vmax.f32 %v72, 1e-24
    %v98 = vmax.f32 %v74, 1e-24
    %v99 = vmax.f32 %v76, 1e-24
    %v100 = vmax.f32 %v78, 1e-24
    %v101 = vmax.f32 %v80, 1e-24
    %v102 = vmax.f32 %v82, 1e-24
    %v103 = vmax.f32 %v84, 1e-24
    %v104 = vmax.f32 %v86, 1e-24
    %v105 = vmax.f32 %v88, 1e-24
    %v106 = vmax.f32 %v90, 1e-24
    %v107 = vrsqrt.pop %v91
    %v108 = vrsqrt.pop %v92
    %v109 = vrsqrt.pop %v93
    %v110 = vrsqrt.pop %v94
    %v111 = vrsqrt.pop %v95
    %v112 = vrsqrt.pop %v96
    %v113 = vrsqrt.pop %v97
    %v114 = vrsqrt.pop %v98
    %v115 = vrsqrt.pop %v99
    %v116 = vrsqrt.pop %v100
    %v117 = vrsqrt.pop %v101
    %v118 = vrsqrt.pop %v102
    %v119 = vrsqrt.pop %v103
    %v120 = vrsqrt.pop %v104
    %v121 = vrsqrt.pop %v105
    %v122 = vrsqrt.pop %v106
    %v123 = vmul.f32 %v27, %v107
    %v124 = vmul.f32 %v28, %v108
    %v125 = vmul.f32 %v29, %v109
    %v126 = vmul.f32 %v30, %v110
    %v127 = vmul.f32 %v31, %v111
    %v128 = vmul.f32 %v32, %v112
    %v129 = vmul.f32 %v33, %v113
    %v130 = vmul.f32 %v34, %v114
    %v131 = vmul.f32 %v35, %v115
    %v132 = vmul.f32 %v36, %v116
    %v133 = vmul.f32 %v37, %v117
    %v134 = vmul.f32 %v38, %v118
    %v135 = vmul.f32 %v39, %v119
    %v136 = vmul.f32 %v40, %v120
    %v137 = vmul.f32 %v41, %v121
    %v138 = vmul.f32 %v42, %v122
    %139 = vst [vmem:[#allocation5] sm:$0xff] %v123
    %140 = vst [vmem:[#allocation5 + $0x8] sm:$0xff] %v124
    %141 = vst [vmem:[#allocation5 + $0x10] sm:$0xff] %v125
    %142 = vst [vmem:[#allocation5 + $0x18] sm:$0xff] %v126
    %143 = vst [vmem:[#allocation5 + $0x20] sm:$0xff] %v127
    %144 = vst [vmem:[#allocation5 + $0x28] sm:$0xff] %v128
    %145 = vst [vmem:[#allocation5 + $0x30] sm:$0xff] %v129
    %146 = vst [vmem:[#allocation5 + $0x38] sm:$0xff] %v130
    %147 = vst [vmem:[#allocation5 + $0x40] sm:$0xff] %v131
    %148 = vst [vmem:[#allocation5 + $0x48] sm:$0xff] %v132
    %149 = vst [vmem:[#allocation5 + $0x50] sm:$0xff] %v133
    %150 = vst [vmem:[#allocation5 + $0x58] sm:$0xff] %v134
    %151 = vst [vmem:[#allocation5 + $0x60] sm:$0xff] %v135
    %152 = vst [vmem:[#allocation5 + $0x68] sm:$0xff] %v136
    %153 = vst [vmem:[#allocation5 + $0x70] sm:$0xff] %v137
    %154 = vst [vmem:[#allocation5 + $0x78] sm:$0xff] %v138
    %v155 = vmul.f32 %v123, -2.0
    %v156 = vmul.f32 %v124, -2.0
    %v157 = vmul.f32 %v125, -2.0
    %v158 = vmul.f32 %v126, -2.0
    %v159 = vmul.f32 %v127, -2.0
    %v160 = vmul.f32 %v128, -2.0
    %v161 = vmul.f32 %v129, -2.0
    %v162 = vmul.f32 %v130, -2.0
    %v163 = vmul.f32 %v131, -2.0
    %v164 = vmul.f32 %v132, -2.0
    %v165 = vmul.f32 %v133, -2.0
    %v166 = vmul.f32 %v134, -2.0
    %v167 = vmul.f32 %v135, -2.0
    %v168 = vmul.f32 %v136, -2.0
    %v169 = vmul.f32 %v137, -2.0
    %v170 = vmul.f32 %v138, -2.0
    %171 = vxpose.xlu0.b32.start [1/16] %v155, 128
    %172 = vxpose.xlu0.b32.cont [2/16] %v156, 128
    %173 = vxpose.xlu0.b32.cont [3/16] %v157, 128
    %174 = vxpose.xlu0.b32.cont [4/16] %v158, 128
    %175 = vxpose.xlu0.b32.cont [5/16] %v159, 128
    %176 = vxpose.xlu0.b32.cont [6/16] %v160, 128
    %177 = vxpose.xlu0.b32.cont [7/16] %v161, 128
    %178 = vxpose.xlu0.b32.cont [8/16] %v162, 128
    %179 = vxpose.xlu0.b32.cont [9/16] %v163, 128
    %180 = vxpose.xlu0.b32.cont [10/16] %v164, 128
    %181 = vxpose.xlu0.b32.cont [11/16] %v165, 128
    %182 = vxpose.xlu0.b32.cont [12/16] %v166, 128
    %183 = vxpose.xlu0.b32.cont [13/16] %v167, 128
    %184 = vxpose.xlu0.b32.cont [14/16] %v168, 128
    %185 = vxpose.xlu0.b32.cont [15/16] %v169, 128
    %186 = vxpose.xlu0.b32.end [16/16] %v170, 128
    %v187 = vpop.trf.xlu0
    %v188 = vpop.trf.xlu0
    %v189 = vpop.trf.xlu0
    %v190 = vpop.trf.xlu0
    %v191 = vpop.trf.xlu0
    %v192 = vpop.trf.xlu0
    %v193 = vpop.trf.xlu0
    %v194 = vpop.trf.xlu0
    %v195 = vpop.trf.xlu0
    %v196 = vpop.trf.xlu0
    %v197 = vpop.trf.xlu0
    %v198 = vpop.trf.xlu0
    %v199 = vpop.trf.xlu0
    %v200 = vpop.trf.xlu0
    %v201 = vpop.trf.xlu0
    %v202 = vpop.trf.xlu0
    %203 = vst [vmem:[#allocation6] sm:$0xff] %v187
    %204 = vst [vmem:[#allocation6 + $0x8] sm:$0xff] %v188
    %205 = vst [vmem:[#allocation6 + $0x10] sm:$0xff] %v189
    %206 = vst [vmem:[#allocation6 + $0x18] sm:$0xff] %v190
    %207 = vst [vmem:[#allocation6 + $0x20] sm:$0xff] %v191
    %208 = vst [vmem:[#allocation6 + $0x28] sm:$0xff] %v192
    %209 = vst [vmem:[#allocation6 + $0x30] sm:$0xff] %v193
    %210 = vst [vmem:[#allocation6 + $0x38] sm:$0xff] %v194
    %211 = vst [vmem:[#allocation6 + $0x40] sm:$0xff] %v195
    %212 = vst [vmem:[#allocation6 + $0x48] sm:$0xff] %v196
    %213 = vst [vmem:[#allocation6 + $0x50] sm:$0xff] %v197
    %214 = vst [vmem:[#allocation6 + $0x58] sm:$0xff] %v198
    %215 = vst [vmem:[#allocation6 + $0x60] sm:$0xff] %v199
    %216 = vst [vmem:[#allocation6 + $0x68] sm:$0xff] %v200
    %217 = vst [vmem:[#allocation6 + $0x70] sm:$0xff] %v201
    %218 = vst [vmem:[#allocation6 + $0x78] sm:$0xff] %v202
    %v219 = vmul.f32 %v123, %v123
    %v220 = vmul.f32 %v124, %v124
    %v221 = vmul.f32 %v125, %v125
    %v222 = vmul.f32 %v126, %v126
    %v223 = vmul.f32 %v127, %v127
    %v224 = vmul.f32 %v128, %v128
    %v225 = vmul.f32 %v129, %v129
    %v226 = vmul.f32 %v130, %v130
    %v227 = vmul.f32 %v131, %v131
    %v228 = vmul.f32 %v132, %v132
    %v229 = vmul.f32 %v133, %v133
    %v230 = vmul.f32 %v134, %v134
    %v231 = vmul.f32 %v135, %v135
    %v232 = vmul.f32 %v136, %v136
    %v233 = vmul.f32 %v137, %v137
    %v234 = vmul.f32 %v138, %v138
    %235 = vadd.xlane.f32.xlu0 %v219
    %v236 = vpop.xlane.xlu0 %235
    %237 = vadd.xlane.f32.xlu0 %v220
    %v238 = vpop.xlane.xlu0 %237
    %239 = vadd.xlane.f32.xlu0 %v221
    %v240 = vpop.xlane.xlu0 %239
    %241 = vadd.xlane.f32.xlu0 %v222
    %v242 = vpop.xlane.xlu0 %241
    %243 = vadd.xlane.f32.xlu0 %v223
    %v244 = vpop.xlane.xlu0 %243
    %245 = vadd.xlane.f32.xlu0 %v224
    %v246 = vpop.xlane.xlu0 %245
    %247 = vadd.xlane.f32.xlu0 %v225
    %v248 = vpop.xlane.xlu0 %247
    %249 = vadd.xlane.f32.xlu0 %v226
    %v250 = vpop.xlane.xlu0 %249
    %251 = vadd.xlane.f32.xlu0 %v227
    %v252 = vpop.xlane.xlu0 %251
    %253 = vadd.xlane.f32.xlu0 %v228
    %v254 = vpop.xlane.xlu0 %253
    %255 = vadd.xlane.f32.xlu0 %v229
    %v256 = vpop.xlane.xlu0 %255
    %257 = vadd.xlane.f32.xlu0 %v230
    %v258 = vpop.xlane.xlu0 %257
    %259 = vadd.xlane.f32.xlu0 %v231
    %v260 = vpop.xlane.xlu0 %259
    %261 = vadd.xlane.f32.xlu0 %v232
    %v262 = vpop.xlane.xlu0 %261
    %263 = vadd.xlane.f32.xlu0 %v233
    %v264 = vpop.xlane.xlu0 %263
    %265 = vadd.xlane.f32.xlu0 %v234
    %v266 = vpop.xlane.xlu0 %265
    %vm267 = vcmask 7168
    %268 = vst.msk [vmem:[%s3] sm:$0xff] %vm267, %v236
    %269 = vst.msk [vmem:[%s3 + $0x8] sm:$0xff] %vm267, %v238
    %270 = vst.msk [vmem:[%s3 + $0x10] sm:$0xff] %vm267, %v240
    %271 = vst.msk [vmem:[%s3 + $0x18] sm:$0xff] %vm267, %v242
    %272 = vst.msk [vmem:[%s3 + $0x20] sm:$0xff] %vm267, %v244
    %273 = vst.msk [vmem:[%s3 + $0x28] sm:$0xff] %vm267, %v246
    %274 = vst.msk [vmem:[%s3 + $0x30] sm:$0xff] %vm267, %v248
    %275 = vst.msk [vmem:[%s3 + $0x38] sm:$0xff] %vm267, %v250
    %276 = vst.msk [vmem:[%s3 + $0x40] sm:$0xff] %vm267, %v252
    %277 = vst.msk [vmem:[%s3 + $0x48] sm:$0xff] %vm267, %v254
    %278 = vst.msk [vmem:[%s3 + $0x50] sm:$0xff] %vm267, %v256
    %279 = vst.msk [vmem:[%s3 + $0x58] sm:$0xff] %vm267, %v258
    %280 = vst.msk [vmem:[%s3 + $0x60] sm:$0xff] %vm267, %v260
    %281 = vst.msk [vmem:[%s3 + $0x68] sm:$0xff] %vm267, %v262
    %282 = vst.msk [vmem:[%s3 + $0x70] sm:$0xff] %vm267, %v264
    %283 = vst.msk [vmem:[%s3 + $0x78] sm:$0xff] %vm267, %v266
    // Predicated region
    $region10: #{tpu_custom_call.1} parent=1 // pred_check
      _
    $region11: #{tpu_custom_call.1} parent=1 // pred_check_branch
      %285 = sbr.rel (0) target = $region13
    $region12: #{tpu_custom_call.1} parent=1 // pred_region
      %s287 = ssub.s32 2048, 2048
      %288 = vsyncadd [#allocation4], %s287
      %s289 = sshll.u32 [#allocation5], 4
      %s290 = int_to_ptr.vmem [resolvable:$true] %s289
      %295 = dma.vmem_to_hbm [thread:$0]  %s290, 2048, %s1, [#allocation4], 128, 128, 8
    $region13: #{tpu_custom_call.1} parent=1 // pred_fallthru
      _
    // Predicated region
    $region14: #{tpu_custom_call.1} parent=1 // pred_check
      _
    $region15: #{tpu_custom_call.1} parent=1 // pred_check_branch
      %297 = sbr.rel (0) target = $region17
    $region16: #{tpu_custom_call.1} parent=1 // pred_region
      %s299 = ssub.s32 2048, 2048
      %300 = vsyncadd [#allocation7], %s299
      %s301 = sshll.u32 [#allocation6], 4
      %s302 = int_to_ptr.vmem [resolvable:$true] %s301
      %307 = dma.vmem_to_hbm [thread:$0]  %s302, 2048, %s2, [#allocation7], 128, 128, 8
    $region17: #{tpu_custom_call.1} parent=1 // pred_fallthru
      _
    // Predicated region
    $region18: #{tpu_custom_call.1} parent=1 // pred_check
      _
    $region19: #{tpu_custom_call.1} parent=1 // pred_check_branch
      %309 = sbr.rel (0) target = $region21
    $region20: #{tpu_custom_call.1} parent=1 // pred_region
      _
    $region21: #{tpu_custom_call.1} parent=1 // pred_fallthru
      _
    // Predicated region
    $region22: #{tpu_custom_call.1} parent=1 // pred_check
      _
    $region23: #{tpu_custom_call.1} parent=1 // pred_check_branch
      %311 = sbr.rel (0) target = $region25
    $region24: #{tpu_custom_call.1} parent=1 // pred_region
      %312 = dma.done [#allocation4], 2048
    $region25: #{tpu_custom_call.1} parent=1 // pred_fallthru
      _
    // Predicated region
    $region26: #{tpu_custom_call.1} parent=1 // pred_check
      _
    $region27: #{tpu_custom_call.1} parent=1 // pred_check_branch
      %314 = sbr.rel (0) target = $region29
    $region28: #{tpu_custom_call.1} parent=1 // pred_region
      %315 = dma.done [#allocation7], 2048
    $region29: #{tpu_custom_call.1} parent=1 // pred_fallthru
      _
    // Predicated region
    $region30: #{tpu_custom_call.1} parent=1 // pred_check
      _
    $region31: #{tpu_custom_call.1} parent=1 // pred_check_branch
      %317 = sbr.rel (0) target = $region33
    $region32: #{tpu_custom_call.1} parent=1 // pred_region
      _
    $region33: #{tpu_custom_call.1} parent=1 // pred_fallthru
      _
    %318 = vsyncpa [#allocation3], 1
    %319 = vsyncpa [#allocation4], 1
    %320 = vsyncpa [#allocation7], 1

</llo_original>
